<compile_context>
chip_gen: v7x
topology: tpu7x:2x2x1
jax: 0.10.0
libtpu: 0.0.40
codegen_flags: <defaults>
</compile_context>

<pallas_src>
import jax
import jax.numpy as jnp
from jax.experimental import pallas as pl
from jax.experimental.pallas import tpu as pltpu


_LANE = 512            # lane-dense last dim (multiple of 128, >=512 for ~85% HBM roofline)
_MAX_BLOCK_ROWS = 1024  # 1024 x 512 x 4B = 2 MiB per f32 block; 2x(in+out) buffers = 8 MiB


def _copy_kernel(x_ref, o_ref):
    # Entire forward pass of Base (empty Sequential) == identity.
    o_ref[...] = x_ref[...]


def _round_up(n: int, m: int) -> int:
    return ((n + m - 1) // m) * m


@jax.jit
def _tiled_identity_copy(x: jax.Array) -> jax.Array:
    """Materialized identity: lane-dense, row-tiled Pallas copy."""
    orig_shape = x.shape
    flat = x.reshape(-1)
    n = flat.shape[0]

    # Present a lane-dense 2D view: (rows, 512), rows a multiple of 8 so the
    # block shape always satisfies the (8, 128) tiling rule.
    rows = _round_up(pl.cdiv(n, _LANE), 8)
    if rows > _MAX_BLOCK_ROWS:
        block_rows = _MAX_BLOCK_ROWS
        rows = _round_up(rows, block_rows)   # exact multi-step grid, no ragged edge
    else:
        block_rows = rows                    # single block, full-extent rows
    padded = rows * _LANE
    if padded != n:
        flat = jnp.pad(flat, (0, padded - n))
    x2d = flat.reshape(rows, _LANE)

    grid = (rows // block_rows,)
    out2d = pl.pallas_call(
        _copy_kernel,
        out_shape=jax.ShapeDtypeStruct((rows, _LANE), x.dtype),
        grid_spec=pltpu.PrefetchScalarGridSpec(
            num_scalar_prefetch=0,
            grid=grid,
            in_specs=[pl.BlockSpec((block_rows, _LANE), lambda i: (i, 0))],
            out_specs=pl.BlockSpec((block_rows, _LANE), lambda i: (i, 0)),
        ),
        compiler_params=pltpu.CompilerParams(
            # Independent copy tiles: shard across both TensorCores on v7x.
            dimension_semantics=("parallel",),
        ),
        # Output aliases the (intermediate) padded input buffer: no extra
        # output allocation is needed for the copy.
        input_output_aliases={0: 0},
    )(x2d)

    return out2d.reshape(-1)[:n].reshape(orig_shape)


def base_forward(x: jax.Array, materialize: bool = False) -> jax.Array:
    """Forward pass of Base: empty nn.Sequential -> identity.

    materialize=False (default): return x directly — the empty Sequential is a
    no-op, so the cheapest correct implementation moves zero bytes.
    materialize=True: force a distinct physical output buffer via the tiled,
    lane-dense Pallas copy kernel.
    """
    if not materialize:
        return x
    return _tiled_identity_copy(x)


# NOTE: Base.__init__ / build_model() create no parameters (empty Sequential),
# so there is nothing to initialize.
# TODO(synk): training / checkpointing / loss-bookkeeping methods of Base are
# host-side orchestration with no kernel equivalent and are not translated.


if __name__ == "__main__":
    key = jax.random.PRNGKey(0)

    # Primary example: small NCHW input consistent with a typical Base subclass.
    x = jax.random.normal(key, (2, 4, 16, 16), dtype=jnp.float32)

    # Zero-cost identity path (true semantics of the empty Sequential).
    y_fast = base_forward(x)
    jax.block_until_ready(y_fast)
    assert y_fast.shape == x.shape and y_fast.dtype == x.dtype
    assert bool(jnp.array_equal(y_fast, x))

    # Materialized path: exercises the Pallas tiled copy kernel.
    y_copy = base_forward(x, materialize=True)
    jax.block_until_ready(y_copy)
    assert y_copy.shape == x.shape and y_copy.dtype == x.dtype
    assert bool(jnp.array_equal(y_copy, x))

    # A second, non-aligned shape to exercise the padding / lane-dense reshape.
    key2 = jax.random.PRNGKey(1)
    x2 = jax.random.normal(key2, (3, 5, 7, 11), dtype=jnp.float32)
    y2 = base_forward(x2, materialize=True)
    jax.block_until_ready(y2)
    assert y2.shape == x2.shape and bool(jnp.array_equal(y2, x2))

    print("KERNEL_OK")
</pallas_src>

<mosaic_0001>
module attributes {stable_mosaic.version = 11 : i64} {
  func.func @_copy_kernel(%arg0: i32, %arg1: memref<8x512xf32, #tpu.memory_space<vmem>>, %arg2: memref<8x512xf32, #tpu.memory_space<vmem>>) attributes {dimension_semantics = [#tpu.dimension_semantics<parallel>], iteration_bounds = array<i64: 1>, scalar_prefetch = 0 : i64, scratch_operands = 0 : i64, tpu.core_type = #tpu.core_type<tc>, window_params = [{transform_indices = @transform_0, window_bounds = array<i64: 8, 512>}, {transform_indices = @transform_1, window_bounds = array<i64: 8, 512>}]} {
    %c0 = arith.constant 0 : index
    %c0_0 = arith.constant 0 : index
    %0 = vector.load %arg1[%c0, %c0_0] : memref<8x512xf32, #tpu.memory_space<vmem>>, vector<8x512xf32>
    %c0_1 = arith.constant 0 : index
    %c0_2 = arith.constant 0 : index
    %1 = vector.load %arg2[%c0_1, %c0_2] : memref<8x512xf32, #tpu.memory_space<vmem>>, vector<8x512xf32>
    tpu.vector_store %arg2[%c0_1, %c0_2], %0 {strides = array<i32>} : memref<8x512xf32, #tpu.memory_space<vmem>>, vector<8x512xf32>,
    return
  }
  func.func @transform_0(%arg0: i32) -> (i32, i32) {
    %c0_i32 = arith.constant 0 : i32
    %c0_i32_0 = arith.constant 0 : i32
    return %arg0, %c0_i32 : i32, i32
  }
  func.func @transform_1(%arg0: i32) -> (i32, i32) {
    %c0_i32 = arith.constant 0 : i32
    %c0_i32_0 = arith.constant 0 : i32
    return %arg0, %c0_i32 : i32, i32
  }
}

</mosaic_0001>

<llo_original>
// kernel: _tiled_identity_copy.1
$region0: #{_tiled_identity_copy.1}
  #allocation0 [shape = 'u32[]', space=smem, size = 0x4, offset = 0x4, fixed_abs, tag = 'smem constant byte address 0x4 - core index']
  #allocation1 [shape = 'u32[144,128]{1,0:T(1,128)}', space=vmem, size = 0x12000, scoped, tag = 'internal scratch']
  %s0 = inlined_call_operand.vmem [shape: f32[8,512], index: 0, kind: input, shape index: {}, may-alias: {0,1}]
  %s1 = inlined_call_operand.vmem [shape: f32[8,512], index: 1, kind: output, shape index: {}, may-alias: {0,1}]
  %s2 = sld [smem:[#allocation0]]
  $region14: #{_tiled_identity_copy.1} parent=0
    _
  %s4 = ssub.s32 1, %s2
  %s5 = scalar_select 0, %s4, %s2
  // Predicated region
  $region2: #{_tiled_identity_copy.1} parent=0 // pred_check
    _
  $region3: #{_tiled_identity_copy.1} parent=0 // pred_check_branch
    %7 = sbr.rel (0) target = $region5
  $region4: #{_tiled_identity_copy.1} parent=0 // pred_region
    _
  $region5: #{_tiled_identity_copy.1} parent=0 // pred_fallthru
    _
  %v8 = vld [vmem:[%s0] sm:$0xff]
  %v9 = vld [vmem:[%s0 + $0x8] sm:$0xff]
  %v10 = vld [vmem:[%s0 + $0x10] sm:$0xff]
  %v11 = vld [vmem:[%s0 + $0x18] sm:$0xff]
  %12 = vst [vmem:[%s1] sm:$0xff] %v8
  %13 = vst [vmem:[%s1 + $0x8] sm:$0xff] %v9
  %14 = vst [vmem:[%s1 + $0x10] sm:$0xff] %v10
  %15 = vst [vmem:[%s1 + $0x18] sm:$0xff] %v11
  // Predicated region
  $region6: #{_tiled_identity_copy.1} parent=0 // pred_check
    _
  $region7: #{_tiled_identity_copy.1} parent=0 // pred_check_branch
    %17 = sbr.rel (0) target = $region9
  $region8: #{_tiled_identity_copy.1} parent=0 // pred_region
    _
  $region9: #{_tiled_identity_copy.1} parent=0 // pred_fallthru
    _
  // Predicated region
  $region10: #{_tiled_identity_copy.1} parent=0 // pred_check
    _
  $region11: #{_tiled_identity_copy.1} parent=0 // pred_check_branch
    %19 = sbr.rel (0) target = $region13
  $region12: #{_tiled_identity_copy.1} parent=0 // pred_region
    _
  $region13: #{_tiled_identity_copy.1} parent=0 // pred_fallthru
    _

</llo_original>
